<compile_context>
chip_gen: v6e
topology: v6e:2x2x1
jax: 0.10.0
libtpu: 0.0.40
codegen_flags: <defaults>
</compile_context>

<pallas_src>
import numpy as np
import jax
import jax.numpy as jnp
from jax import lax
from jax.experimental import pallas as pl
from jax.experimental.pallas import tpu as pltpu


# ----------------------------------------------------------------------------
# Host-side (glue) constant builders
# ----------------------------------------------------------------------------
def _adaptive_windows(in_size, out_size):
    """Per output cell: tuple of (input index, weight).  Reproduces
    F.adaptive_avg_pool2d index arithmetic (handles non-divisible sizes)."""
    wins = []
    for o in range(out_size):
        s = (o * in_size) // out_size
        e = -((-(o + 1) * in_size) // out_size)   # ceil((o+1)*in/out)
        wgt = 1.0 / (e - s)
        wins.append(tuple((i, wgt) for i in range(s, e)))
    return tuple(wins)


def _build_col_pool_matrix(W, mw):
    """Cm[w, oj] = weight of input column w in adaptive-pool cell oj (else 0)."""
    Cm = np.zeros((W, mw), np.float32)
    for oj, win in enumerate(_adaptive_windows(W, mw)):
        for j, wgt in win:
            Cm[j, oj] = wgt
    return Cm


def _build_tap_masks(mh, mw):
    """masks[t, 0, oi*mw+oj] = 1 if tap t's source cell (oi+dy, oj+dx) is in
    range (zero padding of the 3x3 conv == mask out-of-range taps)."""
    m = np.zeros((9, 1, mh * mw), np.float32)
    t = 0
    for dy in (-1, 0, 1):
        for dx in (-1, 0, 1):
            for oi in range(mh):
                for oj in range(mw):
                    if 0 <= oi + dy < mh and 0 <= oj + dx < mw:
                        m[t, 0, oi * mw + oj] = 1.0
            t += 1
    return m


# ----------------------------------------------------------------------------
# Pallas kernel: one batch element per grid step (batch axis is "parallel")
# ----------------------------------------------------------------------------
def _make_mask_s_kernel(C, mh, mw, row_windows):
    MM = mh * mw
    PAD = mw + 1
    taps = tuple((dy, dx) for dy in (-1, 0, 1) for dx in (-1, 0, 1))

    def kernel(x_ref, cmat_ref, wstack_ref, masks_ref, bias_ref,
               mask_ref, norm_ref, t1_ref, ypad_ref):
        # x_ref: (1, H*C, W) with rows ordered (h, c)
        x2 = x_ref[0]

        # ---- adaptive avg pool, column direction: one small matmul (MXU) ----
        t1_ref[...] = jnp.dot(x2, cmat_ref[...],
                              preferred_element_type=jnp.float32)   # (H*C, mw)

        # ---- adaptive avg pool, row direction: weighted sums of contiguous
        #      (C, mw) row blocks; assemble (C, MM) as one lane-dense value ----
        row_blocks = []
        for oi in range(mh):
            acc = None
            for h, wgt in row_windows[oi]:
                blk = t1_ref[pl.ds(h * C, C), :] * wgt
                acc = blk if acc is None else acc + blk
            row_blocks.append(acc)
        pooled = jnp.concatenate(row_blocks, axis=-1)                # (C, MM)

        # ---- 3x3 conv (stride 1, pad 1):
        #      ONE stacked channel-mix matmul for all 9 taps ... ---------------
        y = jnp.dot(wstack_ref[...], pooled,
                    preferred_element_type=jnp.float32)              # (9C, MM)
        # ... then 9 cheap shifted slice reads of a zero-padded scratch + masks
        ypad_ref[...] = jnp.zeros(ypad_ref.shape, jnp.float32)
        ypad_ref[:, pl.ds(PAD, MM)] = y
        conv = jnp.zeros((C, MM), jnp.float32)
        for t, (dy, dx) in enumerate(taps):
            s = dy * mw + dx
            tap = ypad_ref[pl.ds(t * C, C), pl.ds(PAD + s, MM)]      # shifted slab
            conv = conv + tap * masks_ref[t]                         # zero padding
        conv = conv + bias_ref[...]                                  # (C,1) bcast

        # ---- GumbelSoftmax gate, deterministic (eval-mode) path --------------
        # TODO(synk): training-mode stochastic Gumbel sampling is not replicated.
        m = (conv >= 0.0).astype(jnp.float32)
        mask_ref[0] = m

        # ---- L1 norm over (C, mh, mw) for this batch element (0/1 mask) ------
        norm_ref[0] = jnp.sum(m, keepdims=True)

    return kernel


# ----------------------------------------------------------------------------
# Wrapper (glue): layout prep, pallas_call, tiling, norm_t
# ----------------------------------------------------------------------------
def mask_s_forward(x, weight, block_h, block_w, bias=None):
    B, C, H, W = x.shape
    mh = int(np.ceil(H / block_h))
    mw = int(np.ceil(W / block_w))
    MM = mh * mw
    PAD = mw + 1

    row_windows = _adaptive_windows(H, mh)
    cmat = jnp.asarray(_build_col_pool_matrix(W, mw))                 # (W, mw)
    masks = jnp.asarray(_build_tap_masks(mh, mw))                     # (9, 1, MM)
    # conv weight (Cout, Cin, 3, 3) -> stacked (9*C, C); row index = t*C + co
    w_stack = jnp.transpose(weight, (2, 3, 0, 1)).reshape(9 * C, C).astype(jnp.float32)
    if bias is None:
        bias_arr = jnp.zeros((C, 1), jnp.float32)
    else:
        bias_arr = jnp.asarray(bias, jnp.float32).reshape(C, 1)
    # x (B, C, H, W) -> (B, H*C, W): rows ordered (h, c) so each pooled row
    # window is a contiguous block of C rows inside the kernel.
    x_arr = jnp.transpose(x, (0, 2, 1, 3)).reshape(B, H * C, W).astype(jnp.float32)

    kernel = _make_mask_s_kernel(C, mh, mw, row_windows)

    mask_small_flat, norm3 = pl.pallas_call(
        kernel,
        out_shape=(
            jax.ShapeDtypeStruct((B, C, MM), jnp.float32),
            jax.ShapeDtypeStruct((B, 1, 1), jnp.float32),
        ),
        grid_spec=pltpu.PrefetchScalarGridSpec(
            num_scalar_prefetch=0,
            grid=(B,),
            in_specs=[
                pl.BlockSpec((1, H * C, W), lambda b: (b, 0, 0)),
                pl.BlockSpec((W, mw), lambda b: (0, 0)),
                pl.BlockSpec((9 * C, C), lambda b: (0, 0)),
                pl.BlockSpec((9, 1, MM), lambda b: (0, 0, 0)),
                pl.BlockSpec((C, 1), lambda b: (0, 0)),
            ],
            out_specs=[
                pl.BlockSpec((1, C, MM), lambda b: (b, 0, 0)),
                pl.BlockSpec((1, 1, 1), lambda b: (b, 0, 0)),
            ],
            scratch_shapes=[
                pltpu.VMEM((H * C, mw), jnp.float32),            # column-pooled
                pltpu.VMEM((9 * C, MM + 2 * PAD), jnp.float32),  # padded taps
            ],
        ),
        compiler_params=pltpu.CompilerParams(
            dimension_semantics=("parallel",)),
    )(x_arr, cmat, w_stack, masks, bias_arr)

    mask_small = mask_small_flat.reshape(B, C, mh, mw)
    # parity with torch `mask_s.repeat(1, 1, block_w, block_h)` (tile, NOT
    # interleave; the original code's block_w/block_h order on dims 2/3 kept)
    mask_s = jnp.tile(mask_small, (1, 1, block_w, block_h))
    norm = norm3[:, 0, 0]
    norm_t = jnp.array([mh * mw], dtype=jnp.float32)   # eleNum_s
    return mask_s, norm, norm_t


# ----------------------------------------------------------------------------
if __name__ == "__main__":
    # Mask_s(h=16, w=16, planes=4, block_w=4, block_h=4, bias=-1) -> no conv bias
    B, C, H, W = 2, 4, 16, 16
    block_h = block_w = 4

    key = jax.random.PRNGKey(0)
    kx, kw = jax.random.split(key)
    x = jax.random.normal(kx, (B, C, H, W), dtype=jnp.float32)
    weight = jax.random.normal(kw, (C, C, 3, 3), dtype=jnp.float32) * 0.1

    mask_s, norm, norm_t = mask_s_forward(x, weight, block_h, block_w)
    jax.block_until_ready((mask_s, norm, norm_t))

    # ---- plain-JAX reference for sanity --------------------------------------
    mh, mw = H // block_h, W // block_w
    pooled_ref_ = x.reshape(B, C, mh, block_h, mw, block_w).mean(axis=(3, 5))
    s_in_ref = lax.conv_general_dilated(
        pooled_ref_, weight, window_strides=(1, 1), padding=((1, 1), (1, 1)),
        dimension_numbers=("NCHW", "OIHW", "NCHW"))
    mask_small_ref = (s_in_ref >= 0).astype(jnp.float32)
    mask_s_ref = jnp.tile(mask_small_ref, (1, 1, block_w, block_h))
    norm_ref_val = mask_small_ref.sum(axis=(1, 2, 3))

    np.testing.assert_allclose(np.asarray(mask_s), np.asarray(mask_s_ref))
    np.testing.assert_allclose(np.asarray(norm), np.asarray(norm_ref_val))
    assert mask_s.shape == (B, C, mh * block_w, mw * block_h)
    assert norm.shape == (B,)
    assert norm_t.shape == (1,)

    print("KERNEL_OK")
</pallas_src>

<mosaic_0001>
module attributes {stable_mosaic.version = 11 : i64} {
  func.func @kernel(%arg0: i32, %arg1: memref<1x64x16xf32, #tpu.memory_space<vmem>>, %arg2: memref<16x4xf32, #tpu.memory_space<vmem>>, %arg3: memref<36x4xf32, #tpu.memory_space<vmem>>, %arg4: memref<9x1x16xf32, #tpu.memory_space<vmem>>, %arg5: memref<4x1xf32, #tpu.memory_space<vmem>>, %arg6: memref<1x4x16xf32, #tpu.memory_space<vmem>>, %arg7: memref<1x1x1xf32, #tpu.memory_space<vmem>>, %arg8: memref<64x4xf32, #tpu.memory_space<vmem>>, %arg9: memref<36x26xf32, #tpu.memory_space<vmem>>) attributes {dimension_semantics = [#tpu.dimension_semantics<parallel>], iteration_bounds = array<i64: 2>, scalar_prefetch = 0 : i64, scratch_operands = 2 : i64, tpu.core_type = #tpu.core_type<tc>, window_params = [{transform_indices = @transform_0, window_bounds = array<i64: 1, 64, 16>}, {pipeline_mode = #tpu.pipeline_mode<synchronous>, transform_indices = @transform_1, window_bounds = array<i64: 16, 4>}, {pipeline_mode = #tpu.pipeline_mode<synchronous>, transform_indices = @transform_2, window_bounds = array<i64: 36, 4>}, {pipeline_mode = #tpu.pipeline_mode<synchronous>, transform_indices = @transform_3, window_bounds = array<i64: 9, 1, 16>}, {pipeline_mode = #tpu.pipeline_mode<synchronous>, transform_indices = @transform_4, window_bounds = array<i64: 4, 1>}, {transform_indices = @transform_5, window_bounds = array<i64: 1, 4, 16>}, {transform_indices = @transform_6, window_bounds = array<i64: 1, 1, 1>}]} {
    %c0 = arith.constant 0 : index
    %c0_0 = arith.constant 0 : index
    %c0_1 = arith.constant 0 : index
    %0 = vector.load %arg1[%c0, %c0_0, %c0_1] : memref<1x64x16xf32, #tpu.memory_space<vmem>>, vector<1x64x16xf32>
    %1 = vector.shape_cast %0 : vector<1x64x16xf32> to vector<64x16xf32>
    %c0_2 = arith.constant 0 : index
    %c0_3 = arith.constant 0 : index
    %2 = vector.load %arg2[%c0_2, %c0_3] : memref<16x4xf32, #tpu.memory_space<vmem>>, vector<16x4xf32>
    %cst = arith.constant dense<0.000000e+00> : vector<64x4xf32>
    %3 = tpu.matmul %1, %2, %cst {dimension_numbers = #tpu.dot_dimension_numbers<[1], [0], [0], [1], [0, 0, 1, 1], [], []>} : vector<64x16xf32>, vector<16x4xf32>, vector<64x4xf32> -> vector<64x4xf32>
    %c0_4 = arith.constant 0 : index
    %c0_5 = arith.constant 0 : index
    %4 = vector.load %arg8[%c0_4, %c0_5] : memref<64x4xf32, #tpu.memory_space<vmem>>, vector<64x4xf32>
    tpu.vector_store %arg8[%c0_4, %c0_5], %3 {strides = array<i32>} : memref<64x4xf32, #tpu.memory_space<vmem>>, vector<64x4xf32>,
    %c0_6 = arith.constant 0 : index
    %c0_7 = arith.constant 0 : index
    %5 = vector.load %arg8[%c0_6, %c0_7] : memref<64x4xf32, #tpu.memory_space<vmem>>, vector<4x4xf32>
    %cst_8 = arith.constant 2.500000e-01 : f32
    %6 = vector.broadcast %cst_8 : f32 to vector<4x4xf32>
    %7 = arith.mulf %5, %6 : vector<4x4xf32>
    %c4 = arith.constant 4 : index
    %c0_9 = arith.constant 0 : index
    %8 = vector.load %arg8[%c4, %c0_9] : memref<64x4xf32, #tpu.memory_space<vmem>>, vector<4x4xf32>
    %cst_10 = arith.constant 2.500000e-01 : f32
    %9 = vector.broadcast %cst_10 : f32 to vector<4x4xf32>
    %10 = arith.mulf %8, %9 : vector<4x4xf32>
    %11 = arith.addf %7, %10 : vector<4x4xf32>
    %c8 = arith.constant 8 : index
    %c0_11 = arith.constant 0 : index
    %12 = vector.load %arg8[%c8, %c0_11] : memref<64x4xf32, #tpu.memory_space<vmem>>, vector<4x4xf32>
    %cst_12 = arith.constant 2.500000e-01 : f32
    %13 = vector.broadcast %cst_12 : f32 to vector<4x4xf32>
    %14 = arith.mulf %12, %13 : vector<4x4xf32>
    %15 = arith.addf %11, %14 : vector<4x4xf32>
    %c12 = arith.constant 12 : index
    %c0_13 = arith.constant 0 : index
    %16 = vector.load %arg8[%c12, %c0_13] : memref<64x4xf32, #tpu.memory_space<vmem>>, vector<4x4xf32>
    %cst_14 = arith.constant 2.500000e-01 : f32
    %17 = vector.broadcast %cst_14 : f32 to vector<4x4xf32>
    %18 = arith.mulf %16, %17 : vector<4x4xf32>
    %19 = arith.addf %15, %18 : vector<4x4xf32>
    %c16 = arith.constant 16 : index
    %c0_15 = arith.constant 0 : index
    %20 = vector.load %arg8[%c16, %c0_15] : memref<64x4xf32, #tpu.memory_space<vmem>>, vector<4x4xf32>
    %cst_16 = arith.constant 2.500000e-01 : f32
    %21 = vector.broadcast %cst_16 : f32 to vector<4x4xf32>
    %22 = arith.mulf %20, %21 : vector<4x4xf32>
    %c20 = arith.constant 20 : index
    %c0_17 = arith.constant 0 : index
    %23 = vector.load %arg8[%c20, %c0_17] : memref<64x4xf32, #tpu.memory_space<vmem>>, vector<4x4xf32>
    %cst_18 = arith.constant 2.500000e-01 : f32
    %24 = vector.broadcast %cst_18 : f32 to vector<4x4xf32>
    %25 = arith.mulf %23, %24 : vector<4x4xf32>
    %26 = arith.addf %22, %25 : vector<4x4xf32>
    %c24 = arith.constant 24 : index
    %c0_19 = arith.constant 0 : index
    %27 = vector.load %arg8[%c24, %c0_19] : memref<64x4xf32, #tpu.memory_space<vmem>>, vector<4x4xf32>
    %cst_20 = arith.constant 2.500000e-01 : f32
    %28 = vector.broadcast %cst_20 : f32 to vector<4x4xf32>
    %29 = arith.mulf %27, %28 : vector<4x4xf32>
    %30 = arith.addf %26, %29 : vector<4x4xf32>
    %c28 = arith.constant 28 : index
    %c0_21 = arith.constant 0 : index
    %31 = vector.load %arg8[%c28, %c0_21] : memref<64x4xf32, #tpu.memory_space<vmem>>, vector<4x4xf32>
    %cst_22 = arith.constant 2.500000e-01 : f32
    %32 = vector.broadcast %cst_22 : f32 to vector<4x4xf32>
    %33 = arith.mulf %31, %32 : vector<4x4xf32>
    %34 = arith.addf %30, %33 : vector<4x4xf32>
    %c32 = arith.constant 32 : index
    %c0_23 = arith.constant 0 : index
    %35 = vector.load %arg8[%c32, %c0_23] : memref<64x4xf32, #tpu.memory_space<vmem>>, vector<4x4xf32>
    %cst_24 = arith.constant 2.500000e-01 : f32
    %36 = vector.broadcast %cst_24 : f32 to vector<4x4xf32>
    %37 = arith.mulf %35, %36 : vector<4x4xf32>
    %c36 = arith.constant 36 : index
    %c0_25 = arith.constant 0 : index
    %38 = vector.load %arg8[%c36, %c0_25] : memref<64x4xf32, #tpu.memory_space<vmem>>, vector<4x4xf32>
    %cst_26 = arith.constant 2.500000e-01 : f32
    %39 = vector.broadcast %cst_26 : f32 to vector<4x4xf32>
    %40 = arith.mulf %38, %39 : vector<4x4xf32>
    %41 = arith.addf %37, %40 : vector<4x4xf32>
    %c40 = arith.constant 40 : index
    %c0_27 = arith.constant 0 : index
    %42 = vector.load %arg8[%c40, %c0_27] : memref<64x4xf32, #tpu.memory_space<vmem>>, vector<4x4xf32>
    %cst_28 = arith.constant 2.500000e-01 : f32
    %43 = vector.broadcast %cst_28 : f32 to vector<4x4xf32>
    %44 = arith.mulf %42, %43 : vector<4x4xf32>
    %45 = arith.addf %41, %44 : vector<4x4xf32>
    %c44 = arith.constant 44 : index
    %c0_29 = arith.constant 0 : index
    %46 = vector.load %arg8[%c44, %c0_29] : memref<64x4xf32, #tpu.memory_space<vmem>>, vector<4x4xf32>
    %cst_30 = arith.constant 2.500000e-01 : f32
    %47 = vector.broadcast %cst_30 : f32 to vector<4x4xf32>
    %48 = arith.mulf %46, %47 : vector<4x4xf32>
    %49 = arith.addf %45, %48 : vector<4x4xf32>
    %c48 = arith.constant 48 : index
    %c0_31 = arith.constant 0 : index
    %50 = vector.load %arg8[%c48, %c0_31] : memref<64x4xf32, #tpu.memory_space<vmem>>, vector<4x4xf32>
    %cst_32 = arith.constant 2.500000e-01 : f32
    %51 = vector.broadcast %cst_32 : f32 to vector<4x4xf32>
    %52 = arith.mulf %50, %51 : vector<4x4xf32>
    %c52 = arith.constant 52 : index
    %c0_33 = arith.constant 0 : index
    %53 = vector.load %arg8[%c52, %c0_33] : memref<64x4xf32, #tpu.memory_space<vmem>>, vector<4x4xf32>
    %cst_34 = arith.constant 2.500000e-01 : f32
    %54 = vector.broadcast %cst_34 : f32 to vector<4x4xf32>
    %55 = arith.mulf %53, %54 : vector<4x4xf32>
    %56 = arith.addf %52, %55 : vector<4x4xf32>
    %c56 = arith.constant 56 : index
    %c0_35 = arith.constant 0 : index
    %57 = vector.load %arg8[%c56, %c0_35] : memref<64x4xf32, #tpu.memory_space<vmem>>, vector<4x4xf32>
    %cst_36 = arith.constant 2.500000e-01 : f32
    %58 = vector.broadcast %cst_36 : f32 to vector<4x4xf32>
    %59 = arith.mulf %57, %58 : vector<4x4xf32>
    %60 = arith.addf %56, %59 : vector<4x4xf32>
    %c60 = arith.constant 60 : index
    %c0_37 = arith.constant 0 : index
    %61 = vector.load %arg8[%c60, %c0_37] : memref<64x4xf32, #tpu.memory_space<vmem>>, vector<4x4xf32>
    %cst_38 = arith.constant 2.500000e-01 : f32
    %62 = vector.broadcast %cst_38 : f32 to vector<4x4xf32>
    %63 = arith.mulf %61, %62 : vector<4x4xf32>
    %64 = arith.addf %60, %63 : vector<4x4xf32>
    %65 = tpu.concatenate %19, %34, %49, %64 in 1 : vector<4x4xf32>, vector<4x4xf32>, vector<4x4xf32>, vector<4x4xf32> -> vector<4x16xf32>
    %c0_39 = arith.constant 0 : index
    %c0_40 = arith.constant 0 : index
    %66 = vector.load %arg3[%c0_39, %c0_40] : memref<36x4xf32, #tpu.memory_space<vmem>>, vector<36x4xf32>
    %cst_41 = arith.constant dense<0.000000e+00> : vector<36x16xf32>
    %67 = tpu.matmul %66, %65, %cst_41 {dimension_numbers = #tpu.dot_dimension_numbers<[1], [0], [0], [1], [0, 0, 1, 1], [], []>} : vector<36x4xf32>, vector<4x16xf32>, vector<36x16xf32> -> vector<36x16xf32>
    %cst_42 = arith.constant 0.000000e+00 : f32
    %68 = vector.broadcast %cst_42 : f32 to vector<36x26xf32>
    %c0_43 = arith.constant 0 : index
    %c0_44 = arith.constant 0 : index
    %69 = vector.load %arg9[%c0_43, %c0_44] : memref<36x26xf32, #tpu.memory_space<vmem>>, vector<36x26xf32>
    tpu.vector_store %arg9[%c0_43, %c0_44], %68 {strides = array<i32>} : memref<36x26xf32, #tpu.memory_space<vmem>>, vector<36x26xf32>,
    %c0_45 = arith.constant 0 : index
    %c5 = arith.constant 5 : index
    %70 = vector.load %arg9[%c0_45, %c5] : memref<36x26xf32, #tpu.memory_space<vmem>>, vector<36x16xf32>
    tpu.vector_store %arg9[%c0_45, %c5], %67 {strides = array<i32>} : memref<36x26xf32, #tpu.memory_space<vmem>>, vector<36x16xf32>,
    %cst_46 = arith.constant 0.000000e+00 : f32
    %71 = vector.broadcast %cst_46 : f32 to vector<4x16xf32>
    %c0_47 = arith.constant 0 : index
    %c0_48 = arith.constant 0 : index
    %72 = vector.load %arg9[%c0_47, %c0_48] : memref<36x26xf32, #tpu.memory_space<vmem>>, vector<4x16xf32>
    %c0_49 = arith.constant 0 : index
    %c0_50 = arith.constant 0 : index
    %c0_51 = arith.constant 0 : index
    %73 = vector.load %arg4[%c0_49, %c0_50, %c0_51] : memref<9x1x16xf32, #tpu.memory_space<vmem>>, vector<1x1x16xf32>
    %74 = vector.shape_cast %73 : vector<1x1x16xf32> to vector<1x16xf32>
    %75 = vector.broadcast %74 : vector<1x16xf32> to vector<4x16xf32>
    %76 = arith.mulf %72, %75 : vector<4x16xf32>
    %77 = arith.addf %71, %76 : vector<4x16xf32>
    %c4_52 = arith.constant 4 : index
    %c1 = arith.constant 1 : index
    %78 = vector.load %arg9[%c4_52, %c1] : memref<36x26xf32, #tpu.memory_space<vmem>>, vector<4x16xf32>
    %c1_53 = arith.constant 1 : index
    %c0_54 = arith.constant 0 : index
    %c0_55 = arith.constant 0 : index
    %79 = vector.load %arg4[%c1_53, %c0_54, %c0_55] : memref<9x1x16xf32, #tpu.memory_space<vmem>>, vector<1x1x16xf32>
    %80 = vector.shape_cast %79 : vector<1x1x16xf32> to vector<1x16xf32>
    %81 = vector.broadcast %80 : vector<1x16xf32> to vector<4x16xf32>
    %82 = arith.mulf %78, %81 : vector<4x16xf32>
    %83 = arith.addf %77, %82 : vector<4x16xf32>
    %c8_56 = arith.constant 8 : index
    %c2 = arith.constant 2 : index
    %84 = vector.load %arg9[%c8_56, %c2] : memref<36x26xf32, #tpu.memory_space<vmem>>, vector<4x16xf32>
    %c2_57 = arith.constant 2 : index
    %c0_58 = arith.constant 0 : index
    %c0_59 = arith.constant 0 : index
    %85 = vector.load %arg4[%c2_57, %c0_58, %c0_59] : memref<9x1x16xf32, #tpu.memory_space<vmem>>, vector<1x1x16xf32>
    %86 = vector.shape_cast %85 : vector<1x1x16xf32> to vector<1x16xf32>
    %87 = vector.broadcast %86 : vector<1x16xf32> to vector<4x16xf32>
    %88 = arith.mulf %84, %87 : vector<4x16xf32>
    %89 = arith.addf %83, %88 : vector<4x16xf32>
    %c12_60 = arith.constant 12 : index
    %c4_61 = arith.constant 4 : index
    %90 = vector.load %arg9[%c12_60, %c4_61] : memref<36x26xf32, #tpu.memory_space<vmem>>, vector<4x16xf32>
    %c3 = arith.constant 3 : index
    %c0_62 = arith.constant 0 : index
    %c0_63 = arith.constant 0 : index
    %91 = vector.load %arg4[%c3, %c0_62, %c0_63] : memref<9x1x16xf32, #tpu.memory_space<vmem>>, vector<1x1x16xf32>
    %92 = vector.shape_cast %91 : vector<1x1x16xf32> to vector<1x16xf32>
    %93 = vector.broadcast %92 : vector<1x16xf32> to vector<4x16xf32>
    %94 = arith.mulf %90, %93 : vector<4x16xf32>
    %95 = arith.addf %89, %94 : vector<4x16xf32>
    %c16_64 = arith.constant 16 : index
    %c5_65 = arith.constant 5 : index
    %96 = vector.load %arg9[%c16_64, %c5_65] : memref<36x26xf32, #tpu.memory_space<vmem>>, vector<4x16xf32>
    %c4_66 = arith.constant 4 : index
    %c0_67 = arith.constant 0 : index
    %c0_68 = arith.constant 0 : index
    %97 = vector.load %arg4[%c4_66, %c0_67, %c0_68] : memref<9x1x16xf32, #tpu.memory_space<vmem>>, vector<1x1x16xf32>
    %98 = vector.shape_cast %97 : vector<1x1x16xf32> to vector<1x16xf32>
    %99 = vector.broadcast %98 : vector<1x16xf32> to vector<4x16xf32>
    %100 = arith.mulf %96, %99 : vector<4x16xf32>
    %101 = arith.addf %95, %100 : vector<4x16xf32>
    %c20_69 = arith.constant 20 : index
    %c6 = arith.constant 6 : index
    %102 = vector.load %arg9[%c20_69, %c6] : memref<36x26xf32, #tpu.memory_space<vmem>>, vector<4x16xf32>
    %c5_70 = arith.constant 5 : index
    %c0_71 = arith.constant 0 : index
    %c0_72 = arith.constant 0 : index
    %103 = vector.load %arg4[%c5_70, %c0_71, %c0_72] : memref<9x1x16xf32, #tpu.memory_space<vmem>>, vector<1x1x16xf32>
    %104 = vector.shape_cast %103 : vector<1x1x16xf32> to vector<1x16xf32>
    %105 = vector.broadcast %104 : vector<1x16xf32> to vector<4x16xf32>
    %106 = arith.mulf %102, %105 : vector<4x16xf32>
    %107 = arith.addf %101, %106 : vector<4x16xf32>
    %c24_73 = arith.constant 24 : index
    %c8_74 = arith.constant 8 : index
    %108 = vector.load %arg9[%c24_73, %c8_74] : memref<36x26xf32, #tpu.memory_space<vmem>>, vector<4x16xf32>
    %c6_75 = arith.constant 6 : index
    %c0_76 = arith.constant 0 : index
    %c0_77 = arith.constant 0 : index
    %109 = vector.load %arg4[%c6_75, %c0_76, %c0_77] : memref<9x1x16xf32, #tpu.memory_space<vmem>>, vector<1x1x16xf32>
    %110 = vector.shape_cast %109 : vector<1x1x16xf32> to vector<1x16xf32>
    %111 = vector.broadcast %110 : vector<1x16xf32> to vector<4x16xf32>
    %112 = arith.mulf %108, %111 : vector<4x16xf32>
    %113 = arith.addf %107, %112 : vector<4x16xf32>
    %c28_78 = arith.constant 28 : index
    %c9 = arith.constant 9 : index
    %114 = vector.load %arg9[%c28_78, %c9] : memref<36x26xf32, #tpu.memory_space<vmem>>, vector<4x16xf32>
    %c7 = arith.constant 7 : index
    %c0_79 = arith.constant 0 : index
    %c0_80 = arith.constant 0 : index
    %115 = vector.load %arg4[%c7, %c0_79, %c0_80] : memref<9x1x16xf32, #tpu.memory_space<vmem>>, vector<1x1x16xf32>
    %116 = vector.shape_cast %115 : vector<1x1x16xf32> to vector<1x16xf32>
    %117 = vector.broadcast %116 : vector<1x16xf32> to vector<4x16xf32>
    %118 = arith.mulf %114, %117 : vector<4x16xf32>
    %119 = arith.addf %113, %118 : vector<4x16xf32>
    %c32_81 = arith.constant 32 : index
    %c10 = arith.constant 10 : index
    %120 = vector.load %arg9[%c32_81, %c10] : memref<36x26xf32, #tpu.memory_space<vmem>>, vector<4x16xf32>
    %c8_82 = arith.constant 8 : index
    %c0_83 = arith.constant 0 : index
    %c0_84 = arith.constant 0 : index
    %121 = vector.load %arg4[%c8_82, %c0_83, %c0_84] : memref<9x1x16xf32, #tpu.memory_space<vmem>>, vector<1x1x16xf32>
    %122 = vector.shape_cast %121 : vector<1x1x16xf32> to vector<1x16xf32>
    %123 = vector.broadcast %122 : vector<1x16xf32> to vector<4x16xf32>
    %124 = arith.mulf %120, %123 : vector<4x16xf32>
    %125 = arith.addf %119, %124 : vector<4x16xf32>
    %c0_85 = arith.constant 0 : index
    %c0_86 = arith.constant 0 : index
    %126 = vector.load %arg5[%c0_85, %c0_86] : memref<4x1xf32, #tpu.memory_space<vmem>>, vector<4x1xf32>
    %127 = vector.broadcast %126 : vector<4x1xf32> to vector<4x16xf32>
    %128 = arith.addf %125, %127 : vector<4x16xf32>
    %cst_87 = arith.constant 0.000000e+00 : f32
    %129 = vector.broadcast %cst_87 : f32 to vector<4x16xf32>
    %130 = arith.cmpf oge, %128, %129 : vector<4x16xf32>
    %131 = arith.extui %130 : vector<4x16xi1> to vector<4x16xi32>
    %132 = arith.sitofp %131 : vector<4x16xi32> to vector<4x16xf32>
    %c0_88 = arith.constant 0 : index
    %c0_89 = arith.constant 0 : index
    %c0_90 = arith.constant 0 : index
    %133 = vector.load %arg6[%c0_88, %c0_89, %c0_90] : memref<1x4x16xf32, #tpu.memory_space<vmem>>, vector<1x4x16xf32>
    %134 = vector.shape_cast %133 : vector<1x4x16xf32> to vector<4x16xf32>
    %135 = vector.shape_cast %132 : vector<4x16xf32> to vector<1x4x16xf32>
    tpu.vector_store %arg6[%c0_88, %c0_89, %c0_90], %135 {strides = array<i32>} : memref<1x4x16xf32, #tpu.memory_space<vmem>>, vector<1x4x16xf32>,
    %136 = vector.shape_cast %132 : vector<4x16xf32> to vector<1x4x16xf32>
    %cst_91 = arith.constant dense<0.000000e+00> : vector<1xf32>
    %137 = vector.multi_reduction <add>, %136, %cst_91 [1, 2] : vector<1x4x16xf32> to vector<1xf32>
    %138 = vector.shape_cast %137 : vector<1xf32> to vector<1x1x1xf32>
    %139 = vector.extract %138[0, 0, 0] : f32 from vector<1x1x1xf32>
    %140 = vector.broadcast %139 : f32 to vector<1x1xf32>
    %c0_92 = arith.constant 0 : index
    %c0_93 = arith.constant 0 : index
    %c0_94 = arith.constant 0 : index
    %141 = vector.load %arg7[%c0_92, %c0_93, %c0_94] : memref<1x1x1xf32, #tpu.memory_space<vmem>>, vector<1x1x1xf32>
    %142 = vector.shape_cast %141 : vector<1x1x1xf32> to vector<1x1xf32>
    %143 = vector.shape_cast %140 : vector<1x1xf32> to vector<1x1x1xf32>
    tpu.vector_store %arg7[%c0_92, %c0_93, %c0_94], %143 {strides = array<i32>} : memref<1x1x1xf32, #tpu.memory_space<vmem>>, vector<1x1x1xf32>,
    return
  }
  func.func @transform_0(%arg0: i32) -> (i32, i32, i32) {
    %c0_i32 = arith.constant 0 : i32
    %c0_i32_0 = arith.constant 0 : i32
    %c0_i32_1 = arith.constant 0 : i32
    return %arg0, %c0_i32, %c0_i32_0 : i32, i32, i32
  }
  func.func @transform_1(%arg0: i32) -> (i32, i32) {
    %c0_i32 = arith.constant 0 : i32
    %c0_i32_0 = arith.constant 0 : i32
    %c0_i32_1 = arith.constant 0 : i32
    return %c0_i32, %c0_i32_0 : i32, i32
  }
  func.func @transform_2(%arg0: i32) -> (i32, i32) {
    %c0_i32 = arith.constant 0 : i32
    %c0_i32_0 = arith.constant 0 : i32
    %c0_i32_1 = arith.constant 0 : i32
    return %c0_i32, %c0_i32_0 : i32, i32
  }
  func.func @transform_3(%arg0: i32) -> (i32, i32, i32) {
    %c0_i32 = arith.constant 0 : i32
    %c0_i32_0 = arith.constant 0 : i32
    %c0_i32_1 = arith.constant 0 : i32
    %c0_i32_2 = arith.constant 0 : i32
    return %c0_i32, %c0_i32_0, %c0_i32_1 : i32, i32, i32
  }
  func.func @transform_4(%arg0: i32) -> (i32, i32) {
    %c0_i32 = arith.constant 0 : i32
    %c0_i32_0 = arith.constant 0 : i32
    %c0_i32_1 = arith.constant 0 : i32
    return %c0_i32, %c0_i32_0 : i32, i32
  }
  func.func @transform_5(%arg0: i32) -> (i32, i32, i32) {
    %c0_i32 = arith.constant 0 : i32
    %c0_i32_0 = arith.constant 0 : i32
    %c0_i32_1 = arith.constant 0 : i32
    return %arg0, %c0_i32, %c0_i32_0 : i32, i32, i32
  }
  func.func @transform_6(%arg0: i32) -> (i32, i32, i32) {
    %c0_i32 = arith.constant 0 : i32
    %c0_i32_0 = arith.constant 0 : i32
    %c0_i32_1 = arith.constant 0 : i32
    return %arg0, %c0_i32, %c0_i32_0 : i32, i32, i32
  }
}

</mosaic_0001>

<llo_original>
// kernel: tpu_custom_call.1
$region0: #{tpu_custom_call.1}
  #allocation0 [shape = 'u32[]', space=smem, size = 0x4, offset = 0x4, fixed_abs, tag = 'smem constant byte address 0x4 - core index']
  #allocation1 [shape = 'u32[144,128]{1,0:T(1,128)}', space=vmem, size = 0x12000, scoped, tag = 'internal scratch']
  #allocation2 [shape = 'f32[64,4]{1,0:T(8,128)}', space=vmem, size = 0x8000, scoped, tag = 'scratch operand']
  #allocation3 [shape = 'f32[36,26]{1,0:T(8,128)}', space=vmem, size = 0x5000, scoped, tag = 'scratch operand']
  %s0 = inlined_call_operand.vmem [shape: f32[2,64,16], index: 0, kind: input, shape index: {}]
  %s1 = inlined_call_operand.vmem [shape: f32[16,4], index: 1, kind: input, shape index: {}]
  %s2 = inlined_call_operand.vmem [shape: f32[36,4], index: 2, kind: input, shape index: {}]
  %s3 = inlined_call_operand.vmem [shape: f32[9,1,16], index: 3, kind: input, shape index: {}]
  %s4 = inlined_call_operand.vmem [shape: f32[4,1], index: 4, kind: input, shape index: {}]
  %s5 = inlined_call_operand.hbm [shape: f32[2,4,16], index: 5, kind: output, shape index: {0}]
  %s6 = inlined_call_operand.vmem [shape: f32[2,1,1], index: 6, kind: output, shape index: {1}]
  %7 = xla_tuple %s5, %s6
  %s8 = sld [smem:[#allocation0]]
  $region61: #{tpu_custom_call.1} parent=0
    _
  %s10 = ssub.s32 1, %s8
  %s11 = scalar_select 0, %s10, %s8
  $region1: #{tpu_custom_call.1} parent=0
    #allocation4 [shape = 'u8[4096]{0}', space=vmem, size = 0x1000, scoped, tag = 'output window, operand 0']
    #allocation5 [shape = 's32[2]{0}', space=sflag, size = 0x8, scoped, tag = 'scoped memory for tpu_custom_call.1']
    %12 = vsyncpa [#allocation5], 0
    %s13 = scalar_lea.sflag [#allocation5], 1
    %14 = vsyncpa %s13, 0
    loop: start=0, step=1, limit=4
    $region2: #{tpu_custom_call.1} parent=1 // loop_pre_header
      _
    $region3: #{tpu_custom_call.1} parent=1 // loop_header
      %s16 = sphi 0, %s20
      %p17 = scmp.ge.s32.totalorder %s16, 4
      %s26 = sphi 0, %s28
      %s29 = sphi 0, %s26
      %s30 = sphi 0, %s29
      %s46 = sphi 0, %s30
      %s50 = sphi 0, %s50
      %s52 = sphi 0, %s50
      %s53 = sphi 0, %s52
      %s67 = sphi 0, %s53
      %s71 = sphi 0, %s71
      %s73 = sphi 0, %s71
      %s74 = sphi 0, %s73
      %s88 = sphi 0, %s74
      %s92 = sphi 0, %s92
      %s94 = sphi 0, %s92
      %s95 = sphi 0, %s94
      %s109 = sphi 0, %s95
      %s113 = sphi 0, %s113
      %s115 = sphi 0, %s113
      %s116 = sphi 0, %s115
      %s130 = sphi 0, %s116
      %s136 = sphi 0, %s138
      %s139 = sphi 0, %s136
      %s140 = sphi 0, %s139
      %s156 = sphi 0, %s140
      %s162 = sphi 0, %s164
      %s165 = sphi 0, %s162
      %s166 = sphi 0, %s165
      %s182 = sphi 0, %s166
    $region4: #{tpu_custom_call.1} parent=1 // loop_header_branch
      %19 = sbr.rel (%p17) target = $region8
    $region5: #{tpu_custom_call.1} parent=1 // loop_body
      %s21 = ssub.s32 %s16, 1
      %s22 = ssub.s32 %s16, 2
      %s23 = sadd.s32 %s16, 1
      %s24 = ssub.s32 %s16, %s23
      %p25 = scmp.eq.s32.totalorder %s24, 0
      %s27 = sadd.s32 %s26, 1
      %s28 = scalar_select %p25, %s26, %s27
      %p31 = pneg %p25
      %p32 = scmp.eq.s32.totalorder %s16, 1
      %p33 = por %p31, %p32
      %p34 = scmp.ne.s32.totalorder %s26, %s29
      %p35 = scmp.eq.s32.totalorder %s16, 0
      %p36 = por %p34, %p35
      %p37 = scmp.ne.s32.totalorder %s26, %s29
      %p38 = scmp.eq.s32.totalorder %s21, 1
      %p39 = por %p37, %p38
      %p40 = scmp.ne.s32.totalorder %s29, %s30
      %p41 = scmp.eq.s32.totalorder %s21, 0
      %p42 = por %p40, %p41
      %p43 = scmp.ne.s32.totalorder %s29, %s30
      %p44 = scmp.eq.s32.totalorder %s22, 1
      %p45 = por %p43, %p44
      %p47 = scmp.ne.s32.totalorder %s30, %s46
      %p48 = scmp.eq.s32.totalorder %s22, 0
      %p49 = por %p47, %p48
      %s51 = sadd.s32 %s50, 1
      %p54 = scmp.eq.s32.totalorder %s16, 1
      %p55 = scmp.ne.s32.totalorder %s50, %s52
      %p56 = scmp.eq.s32.totalorder %s16, 0
      %p57 = por %p55, %p56
      %p58 = scmp.ne.s32.totalorder %s50, %s52
      %p59 = scmp.eq.s32.totalorder %s21, 1
      %p60 = por %p58, %p59
      %p61 = scmp.ne.s32.totalorder %s52, %s53
      %p62 = scmp.eq.s32.totalorder %s21, 0
      %p63 = por %p61, %p62
      %p64 = scmp.ne.s32.totalorder %s52, %s53
      %p65 = scmp.eq.s32.totalorder %s22, 1
      %p66 = por %p64, %p65
      %p68 = scmp.ne.s32.totalorder %s53, %s67
      %p69 = scmp.eq.s32.totalorder %s22, 0
      %p70 = por %p68, %p69
      %s72 = sadd.s32 %s71, 1
      %p75 = scmp.eq.s32.totalorder %s16, 1
      %p76 = scmp.ne.s32.totalorder %s71, %s73
      %p77 = scmp.eq.s32.totalorder %s16, 0
      %p78 = por %p76, %p77
      %p79 = scmp.ne.s32.totalorder %s71, %s73
      %p80 = scmp.eq.s32.totalorder %s21, 1
      %p81 = por %p79, %p80
      %p82 = scmp.ne.s32.totalorder %s73, %s74
      %p83 = scmp.eq.s32.totalorder %s21, 0
      %p84 = por %p82, %p83
      %p85 = scmp.ne.s32.totalorder %s73, %s74
      %p86 = scmp.eq.s32.totalorder %s22, 1
      %p87 = por %p85, %p86
      %p89 = scmp.ne.s32.totalorder %s74, %s88
      %p90 = scmp.eq.s32.totalorder %s22, 0
      %p91 = por %p89, %p90
      %s93 = sadd.s32 %s92, 1
      %p96 = scmp.eq.s32.totalorder %s16, 1
      %p97 = scmp.ne.s32.totalorder %s92, %s94
      %p98 = scmp.eq.s32.totalorder %s16, 0
      %p99 = por %p97, %p98
      %p100 = scmp.ne.s32.totalorder %s92, %s94
      %p101 = scmp.eq.s32.totalorder %s21, 1
      %p102 = por %p100, %p101
      %p103 = scmp.ne.s32.totalorder %s94, %s95
      %p104 = scmp.eq.s32.totalorder %s21, 0
      %p105 = por %p103, %p104
      %p106 = scmp.ne.s32.totalorder %s94, %s95
      %p107 = scmp.eq.s32.totalorder %s22, 1
      %p108 = por %p106, %p107
      %p110 = scmp.ne.s32.totalorder %s95, %s109
      %p111 = scmp.eq.s32.totalorder %s22, 0
      %p112 = por %p110, %p111
      %s114 = sadd.s32 %s113, 1
      %p117 = scmp.eq.s32.totalorder %s16, 1
      %p118 = scmp.ne.s32.totalorder %s113, %s115
      %p119 = scmp.eq.s32.totalorder %s16, 0
      %p120 = por %p118, %p119
      %p121 = scmp.ne.s32.totalorder %s113, %s115
      %p122 = scmp.eq.s32.totalorder %s21, 1
      %p123 = por %p121, %p122
      %p124 = scmp.ne.s32.totalorder %s115, %s116
      %p125 = scmp.eq.s32.totalorder %s21, 0
      %p126 = por %p124, %p125
      %p127 = scmp.ne.s32.totalorder %s115, %s116
      %p128 = scmp.eq.s32.totalorder %s22, 1
      %p129 = por %p127, %p128
      %p131 = scmp.ne.s32.totalorder %s116, %s130
      %p132 = scmp.eq.s32.totalorder %s22, 0
      %p133 = por %p131, %p132
      %s134 = ssub.s32 %s16, %s23
      %p135 = scmp.eq.s32.totalorder %s134, 0
      %s137 = sadd.s32 %s136, 1
      %s138 = scalar_select %p135, %s136, %s137
      %p141 = pneg %p135
      %p142 = scmp.eq.s32.totalorder %s16, 1
      %p143 = por %p141, %p142
      %p144 = scmp.ne.s32.totalorder %s136, %s139
      %p145 = scmp.eq.s32.totalorder %s16, 0
      %p146 = por %p144, %p145
      %p147 = scmp.ne.s32.totalorder %s136, %s139
      %p148 = scmp.eq.s32.totalorder %s21, 1
      %p149 = por %p147, %p148
      %p150 = scmp.ne.s32.totalorder %s139, %s140
      %p151 = scmp.eq.s32.totalorder %s21, 0
      %p152 = por %p150, %p151
      %p153 = scmp.ne.s32.totalorder %s139, %s140
      %p154 = scmp.eq.s32.totalorder %s22, 1
      %p155 = por %p153, %p154
      %p157 = scmp.ne.s32.totalorder %s140, %s156
      %p158 = scmp.eq.s32.totalorder %s22, 0
      %p159 = por %p157, %p158
      %s160 = ssub.s32 %s16, %s23
      %p161 = scmp.eq.s32.totalorder %s160, 0
      %s163 = sadd.s32 %s162, 1
      %s164 = scalar_select %p161, %s162, %s163
      %p167 = pneg %p161
      %p168 = scmp.eq.s32.totalorder %s16, 1
      %p169 = por %p167, %p168
      %p170 = scmp.ne.s32.totalorder %s162, %s165
      %p171 = scmp.eq.s32.totalorder %s16, 0
      %p172 = por %p170, %p171
      %p173 = scmp.ne.s32.totalorder %s162, %s165
      %p174 = scmp.eq.s32.totalorder %s21, 1
      %p175 = por %p173, %p174
      %p176 = scmp.ne.s32.totalorder %s165, %s166
      %p177 = scmp.eq.s32.totalorder %s21, 0
      %p178 = por %p176, %p177
      %p179 = scmp.ne.s32.totalorder %s165, %s166
      %p180 = scmp.eq.s32.totalorder %s22, 1
      %p181 = por %p179, %p180
      %p183 = scmp.ne.s32.totalorder %s166, %s182
      %p184 = scmp.eq.s32.totalorder %s22, 0
      %p185 = por %p183, %p184
      %p186 = scmp.le.s32.totalorder 1, %s16
      %p187 = scmp.lt.s32.totalorder %s16, 3
      %p188 = pnand %p186, %p187
      %p189 = pneg %p188
      // Predicated region
      $region9: #{tpu_custom_call.1} parent=5 // pred_check
        _
      $region10: #{tpu_custom_call.1} parent=5 // pred_check_branch
        %191 = sbr.rel (%p188) target = $region12
      $region11: #{tpu_custom_call.1} parent=5 // pred_region
        %s192 = ssub.s32 %s16, 1
        // Predicated region
        $region13: #{tpu_custom_call.1} parent=11 // pred_check
          %p193 = pneg %p63
        $region14: #{tpu_custom_call.1} parent=11 // pred_check_branch
          %195 = sbr.rel (%p193) target = $region16
        $region15: #{tpu_custom_call.1} parent=11 // pred_region
          _
        $region16: #{tpu_custom_call.1} parent=11 // pred_fallthru
          _
        // Predicated region
        $region17: #{tpu_custom_call.1} parent=11 // pred_check
          %p196 = pneg %p84
        $region18: #{tpu_custom_call.1} parent=11 // pred_check_branch
          %198 = sbr.rel (%p196) target = $region20
        $region19: #{tpu_custom_call.1} parent=11 // pred_region
          _
        $region20: #{tpu_custom_call.1} parent=11 // pred_fallthru
          _
        // Predicated region
        $region21: #{tpu_custom_call.1} parent=11 // pred_check
          %p199 = pneg %p105
        $region22: #{tpu_custom_call.1} parent=11 // pred_check_branch
          %201 = sbr.rel (%p199) target = $region24
        $region23: #{tpu_custom_call.1} parent=11 // pred_region
          _
        $region24: #{tpu_custom_call.1} parent=11 // pred_fallthru
          _
        // Predicated region
        $region25: #{tpu_custom_call.1} parent=11 // pred_check
          %p202 = pneg %p126
        $region26: #{tpu_custom_call.1} parent=11 // pred_check_branch
          %204 = sbr.rel (%p202) target = $region28
        $region27: #{tpu_custom_call.1} parent=11 // pred_region
          _
        $region28: #{tpu_custom_call.1} parent=11 // pred_fallthru
          _
      $region12: #{tpu_custom_call.1} parent=5 // pred_fallthru
        _
      %p205 = scmp.lt.s32.totalorder %s16, 2
      // Predicated region
      $region29: #{tpu_custom_call.1} parent=5 // pred_check
        %p206 = pneg %p205
      $region30: #{tpu_custom_call.1} parent=5 // pred_check_branch
        %208 = sbr.rel (%p206) target = $region32
      $region31: #{tpu_custom_call.1} parent=5 // pred_region
        // Predicated region
        $region33: #{tpu_custom_call.1} parent=31 // pred_check
          %p209 = pneg %p36
        $region34: #{tpu_custom_call.1} parent=31 // pred_check_branch
          %211 = sbr.rel (%p209) target = $region36
        $region35: #{tpu_custom_call.1} parent=31 // pred_region
          %p212 = scmp.lt.s32.totalorder %s16, 1
          %s213 = scalar_select %p212, %s16, 1
          %s214 = smul.addr %s213, 8
          %s215 = smul.addr %s214, 8
          %s216 = scalar_lea.vmem %s0, %s215
        $region36: #{tpu_custom_call.1} parent=31 // pred_fallthru
          _
      $region32: #{tpu_custom_call.1} parent=5 // pred_fallthru
        _
      %p217 = scmp.le.s32.totalorder 1, %s16
      %p218 = scmp.lt.s32.totalorder %s16, 3
      %p219 = pnand %p217, %p218
      %p220 = pneg %p219
      // Predicated region
      $region37: #{tpu_custom_call.1} parent=5 // pred_check
        _
      $region38: #{tpu_custom_call.1} parent=5 // pred_check_branch
        %222 = sbr.rel (%p219) target = $region40
      $region39: #{tpu_custom_call.1} parent=5 // pred_region
        %s223 = ssub.s32 %s16, 1
        %p224 = scmp.lt.s32.totalorder %s21, 1
        %s225 = scalar_select %p224, %s21, 1
        %s226 = smul.addr %s225, 8
        %s227 = smul.addr %s226, 8
        %s228 = scalar_lea.vmem %s0, %s227
        %p229 = pneg %p42
        %p230 = pneg %p39
        %p231 = pneg %p63
        %p232 = pneg %p60
        %p233 = pneg %p84
        %p234 = pneg %p81
        %p235 = pneg %p105
        %p236 = pneg %p102
        %p237 = pneg %p126
        %p238 = pneg %p123
        %p239 = pneg %p152
        %p240 = pneg %p149
        %s241 = sand.u32 %s139, 1
        %s242 = scalar_lea.sflag [#allocation5], %s241
        %s243 = sand.u32 %s139, 1
        %s244 = smul.addr %s243, 4
        %s245 = scalar_lea.vmem [#allocation4], %s244
        %p246 = pneg %p178
        %p247 = pneg %p175
        %p248 = scmp.lt.s32.totalorder %s21, 1
        %s249 = scalar_select %p248, %s21, 1
        %s250 = scalar_lea.vmem %s6, %s249
        %p251 = scmp.lt.s32.totalorder %s21, 1
        %s252 = scalar_select %p251, %s21, 1
        %s253 = smul.addr %s252, 8
        %s254 = smul.addr %s253, 8
        %s255 = scalar_lea.vmem %s0, %s254
        %p256 = scmp.lt.s32.totalorder %s21, 1
        %s257 = scalar_select %p256, %s21, 1
        %s258 = scalar_lea.vmem %s6, %s257
        %v259 = vld [vmem:[%s255] sm:$0xff]
        %v260 = vld [vmem:[%s255 + $0x8] sm:$0xff]
        %v261 = vld [vmem:[%s255 + $0x10] sm:$0xff]
        %v262 = vld [vmem:[%s255 + $0x18] sm:$0xff]
        %v263 = vld [vmem:[%s255 + $0x20] sm:$0xff]
        %v264 = vld [vmem:[%s255 + $0x28] sm:$0xff]
        %v265 = vld [vmem:[%s255 + $0x30] sm:$0xff]
        %v266 = vld [vmem:[%s255 + $0x38] sm:$0xff]
        %v267 = vld [vmem:[%s1] sm:$0xff]
        %v268 = vld [vmem:[%s1 + $0x8] sm:$0xff]
        %vm269 = vcmask 130048
        %v271 = vsel %vm269, %v259, 0
        %v274 = vsel %vm269, %v260, 0
        %v277 = vsel %vm269, %v261, 0
        %v280 = vsel %vm269, %v262, 0
        %v283 = vsel %vm269, %v263, 0
        %v286 = vsel %vm269, %v264, 0
        %v289 = vsel %vm269, %v265, 0
        %v292 = vsel %vm269, %v266, 0
        %294 = vmatprep.subr.mxu0 0.0
        %295 = vmatpush1.msra.mxu0 0.0
        %296 = vmatprep.subr.mxu0 0.0
        %297 = vmatpush1.msra.mxu0 0.0
        %298 = vmatprep.subr.mxu0 0.0
        %299 = vmatpush1.msra.mxu0 0.0
        %300 = vmatprep.subr.mxu0 0.0
        %301 = vmatpush1.msra.mxu0 0.0
        %302 = vmatprep.subr.mxu0 0.0
        %303 = vmatpush1.msra.mxu0 0.0
        %304 = vmatprep.subr.mxu0 0.0
        %305 = vmatpush1.msra.mxu0 0.0
        %306 = vmatprep.subr.mxu0 0.0
        %307 = vmatpush1.msra.mxu0 0.0
        %308 = vmatprep.subr.mxu0 0.0
        %309 = vmatpush1.msra.mxu0 0.0
        %310 = vmatprep.subr.mxu0 0.0
        %311 = vmatpush1.msra.mxu0 0.0
        %312 = vmatprep.subr.mxu0 0.0
        %313 = vmatpush1.msra.mxu0 0.0
        %314 = vmatprep.subr.mxu0 0.0
        %315 = vmatpush1.msra.mxu0 0.0
        %316 = vmatprep.subr.mxu0 0.0
        %317 = vmatpush1.msra.mxu0 0.0
        %318 = vmatprep.subr.mxu0 0.0
        %319 = vmatpush1.msra.mxu0 0.0
        %320 = vmatprep.subr.mxu0 0.0
        %321 = vmatpush1.msra.mxu0 0.0
        %322 = vmatprep.subr.mxu0 0.0
        %323 = vmatpush1.msra.mxu0 %v268
        %324 = vmatprep.subr.mxu0 0.0
        %325 = vmatpush1.msra.mxu0 %v267
        %326 = vmatprep.subr.mxu0 0.0
        %327 = vmatpush2.msra.mxu0 0.0
        %328 = vmatprep.subr.mxu0 0.0
        %329 = vmatpush2.msra.mxu0 0.0
        %330 = vmatprep.subr.mxu0 0.0
        %331 = vmatpush2.msra.mxu0 0.0
        %332 = vmatprep.subr.mxu0 0.0
        %333 = vmatpush2.msra.mxu0 0.0
        %334 = vmatprep.subr.mxu0 0.0
        %335 = vmatpush2.msra.mxu0 0.0
        %336 = vmatprep.subr.mxu0 0.0
        %337 = vmatpush2.msra.mxu0 0.0
        %338 = vmatprep.subr.mxu0 0.0
        %339 = vmatpush2.msra.mxu0 0.0
        %340 = vmatprep.subr.mxu0 0.0
        %341 = vmatpush2.msra.mxu0 0.0
        %342 = vmatprep.subr.mxu0 0.0
        %343 = vmatpush2.msra.mxu0 0.0
        %344 = vmatprep.subr.mxu0 0.0
        %345 = vmatpush2.msra.mxu0 0.0
        %346 = vmatprep.subr.mxu0 0.0
        %347 = vmatpush2.msra.mxu0 0.0
        %348 = vmatprep.subr.mxu0 0.0
        %349 = vmatpush2.msra.mxu0 0.0
        %350 = vmatprep.subr.mxu0 0.0
        %351 = vmatpush2.msra.mxu0 0.0
        %352 = vmatprep.subr.mxu0 0.0
        %353 = vmatpush2.msra.mxu0 0.0
        %354 = vmatprep.subr.mxu0 0.0
        %355 = vmatpush2.msra.mxu0 0.0
        %356 = vmatprep.subr.mxu0 0.0
        %357 = vmatpush2.msra.mxu0 0.0
        %358 = vmatprep.mubr.f32.mxu0 0.0
        %359 = vmatmul.mubr.f32.gmra.mxu0 %v271
        %v360 = vpop.f32.mrf.mxu0
        %v361 = vadd.f32 0.0, %v360
        %v362 = vpop.f32.mrf.mxu0
        %363 = vmatprep.mubr.f32.mxu0 0.0
        %364 = vmatmul.mubr.f32.gmra.mxu0 %v274
        %v365 = vpop.f32.mrf.mxu0
        %v366 = vadd.f32 0.0, %v365
        %v367 = vpop.f32.mrf.mxu0
        %368 = vmatprep.mubr.f32.mxu0 0.0
        %369 = vmatmul.mubr.f32.gmra.mxu0 %v277
        %v370 = vpop.f32.mrf.mxu0
        %v371 = vadd.f32 0.0, %v370
        %v372 = vpop.f32.mrf.mxu0
        %373 = vmatprep.mubr.f32.mxu0 0.0
        %374 = vmatmul.mubr.f32.gmra.mxu0 %v280
        %v375 = vpop.f32.mrf.mxu0
        %v376 = vadd.f32 0.0, %v375
        %v377 = vpop.f32.mrf.mxu0
        %378 = vmatprep.mubr.f32.mxu0 0.0
        %379 = vmatmul.mubr.f32.gmra.mxu0 %v283
        %v380 = vpop.f32.mrf.mxu0
        %v381 = vadd.f32 0.0, %v380
        %v382 = vpop.f32.mrf.mxu0
        %383 = vmatprep.mubr.f32.mxu0 0.0
        %384 = vmatmul.mubr.f32.gmra.mxu0 %v286
        %v385 = vpop.f32.mrf.mxu0
        %v386 = vadd.f32 0.0, %v385
        %v387 = vpop.f32.mrf.mxu0
        %388 = vmatprep.mubr.f32.mxu0 0.0
        %389 = vmatmul.mubr.f32.gmra.mxu0 %v289
        %v390 = vpop.f32.mrf.mxu0
        %v391 = vadd.f32 0.0, %v390
        %v392 = vpop.f32.mrf.mxu0
        %393 = vmatprep.mubr.f32.mxu0 0.0
        %394 = vmatmul.mubr.f32.gmra.mxu0 %v292
        %v395 = vpop.f32.mrf.mxu0
        %v396 = vadd.f32 0.0, %v395
        %v397 = vpop.f32.mrf.mxu0
        %398 = vdwg.mxu0
        %vm399 = vcmask 31744
        %400 = vst.msk [vmem:[#allocation2] sm:$0xff] %vm399, %v361
        %401 = vst.msk [vmem:[#allocation2 + $0x8] sm:$0xff] %vm399, %v366
        %402 = vst.msk [vmem:[#allocation2 + $0x10] sm:$0xff] %vm399, %v371
        %403 = vst.msk [vmem:[#allocation2 + $0x18] sm:$0xff] %vm399, %v376
        %404 = vst.msk [vmem:[#allocation2 + $0x20] sm:$0xff] %vm399, %v381
        %405 = vst.msk [vmem:[#allocation2 + $0x28] sm:$0xff] %vm399, %v386
        %406 = vst.msk [vmem:[#allocation2 + $0x30] sm:$0xff] %vm399, %v391
        %407 = vst.msk [vmem:[#allocation2 + $0x38] sm:$0xff] %vm399, %v396
        %v408 = vld [vmem:[#allocation2] sm:$0xf]
        %v409 = vmul.f32 %v408, 0.25
        %v410 = vld [vmem:[#allocation2 + $0x4] sm:$0xf]
        %v411 = vmul.f32 %v410, 0.25
        %v412 = vadd.f32 %v409, %v411
        %v413 = vld [vmem:[#allocation2 + $0x8] sm:$0xf]
        %v414 = vmul.f32 %v413, 0.25
        %v415 = vadd.f32 %v412, %v414
        %v416 = vld [vmem:[#allocation2 + $0xc] sm:$0xf]
        %v417 = vmul.f32 %v416, 0.25
        %v418 = vadd.f32 %v415, %v417
        %v419 = vld [vmem:[#allocation2 + $0x10] sm:$0xf]
        %v420 = vmul.f32 %v419, 0.25
        %v421 = vld [vmem:[#allocation2 + $0x14] sm:$0xf]
        %v422 = vmul.f32 %v421, 0.25
        %v423 = vadd.f32 %v420, %v422
        %v424 = vld [vmem:[#allocation2 + $0x18] sm:$0xf]
        %v425 = vmul.f32 %v424, 0.25
        %v426 = vadd.f32 %v423, %v425
        %v427 = vld [vmem:[#allocation2 + $0x1c] sm:$0xf]
        %v428 = vmul.f32 %v427, 0.25
        %v429 = vadd.f32 %v426, %v428
        %v430 = vld [vmem:[#allocation2 + $0x20] sm:$0xf]
        %v431 = vmul.f32 %v430, 0.25
        %v432 = vld [vmem:[#allocation2 + $0x24] sm:$0xf]
        %v433 = vmul.f32 %v432, 0.25
        %v434 = vadd.f32 %v431, %v433
        %v435 = vld [vmem:[#allocation2 + $0x28] sm:$0xf]
        %v436 = vmul.f32 %v435, 0.25
        %v437 = vadd.f32 %v434, %v436
        %v438 = vld [vmem:[#allocation2 + $0x2c] sm:$0xf]
        %v439 = vmul.f32 %v438, 0.25
        %v440 = vadd.f32 %v437, %v439
        %v441 = vld [vmem:[#allocation2 + $0x30] sm:$0xf]
        %v442 = vmul.f32 %v441, 0.25
        %v443 = vld [vmem:[#allocation2 + $0x34] sm:$0xf]
        %v444 = vmul.f32 %v443, 0.25
        %v445 = vadd.f32 %v442, %v444
        %v446 = vld [vmem:[#allocation2 + $0x38] sm:$0xf]
        %v447 = vmul.f32 %v446, 0.25
        %v448 = vadd.f32 %v445, %v447
        %v449 = vld [vmem:[#allocation2 + $0x3c] sm:$0xf]
        %v450 = vmul.f32 %v449, 0.25
        %v451 = vadd.f32 %v448, %v450
        %453 = vrot.lane.b32.xlu0 %v429, 4
        %v454 = vpop.permute.xlu0 %453
        %457 = vrot.lane.b32.xlu0 %v440, 8
        %v458 = vpop.permute.xlu0 %457
        %461 = vrot.lane.b32.xlu0 %v451, 12
        %v462 = vpop.permute.xlu0 %461
        %v464 = vsel %vm399, %v418, %v454
        %vm465 = vcmask 64512
        %v466 = vsel %vm465, %v464, %v458
        %vm467 = vcmask 97280
        %v468 = vsel %vm467, %v466, %v462
        %v469 = vld [vmem:[%s2] sm:$0xff]
        %v470 = vld [vmem:[%s2 + $0x8] sm:$0xff]
        %v471 = vld [vmem:[%s2 + $0x10] sm:$0xff]
        %v472 = vld [vmem:[%s2 + $0x18] sm:$0xff]
        %v473 = vld [vmem:[%s2 + $0x20] sm:$0xf]
        %v475 = vsel %vm399, %v469, 0
        %v478 = vsel %vm399, %v470, 0
        %v481 = vsel %vm399, %v471, 0
        %v484 = vsel %vm399, %v472, 0
        %v487 = vsel %vm399, %v473, 0
        %vm489 = vcmask 1043456
        %v491 = vsel %vm489, %v468, 0
        %493 = vmatprep.subr.mxu0 0.0
        %494 = vmatpush1.msra.mxu0 0.0
        %495 = vmatprep.subr.mxu0 0.0
        %496 = vmatpush1.msra.mxu0 0.0
        %497 = vmatprep.subr.mxu0 0.0
        %498 = vmatpush1.msra.mxu0 0.0
        %499 = vmatprep.subr.mxu0 0.0
        %500 = vmatpush1.msra.mxu0 0.0
        %501 = vmatprep.subr.mxu0 0.0
        %502 = vmatpush1.msra.mxu0 0.0
        %503 = vmatprep.subr.mxu0 0.0
        %504 = vmatpush1.msra.mxu0 0.0
        %505 = vmatprep.subr.mxu0 0.0
        %506 = vmatpush1.msra.mxu0 0.0
        %507 = vmatprep.subr.mxu0 0.0
        %508 = vmatpush1.msra.mxu0 0.0
        %509 = vmatprep.subr.mxu0 0.0
        %510 = vmatpush1.msra.mxu0 0.0
        %511 = vmatprep.subr.mxu0 0.0
        %512 = vmatpush1.msra.mxu0 0.0
        %513 = vmatprep.subr.mxu0 0.0
        %514 = vmatpush1.msra.mxu0 0.0
        %515 = vmatprep.subr.mxu0 0.0
        %516 = vmatpush1.msra.mxu0 0.0
        %517 = vmatprep.subr.mxu0 0.0
        %518 = vmatpush1.msra.mxu0 0.0
        %519 = vmatprep.subr.mxu0 0.0
        %520 = vmatpush1.msra.mxu0 0.0
        %521 = vmatprep.subr.mxu0 0.0
        %522 = vmatpush1.msra.mxu0 0.0
        %523 = vmatprep.subr.mxu0 0.0
        %524 = vmatpush1.msra.mxu0 %v491
        %525 = vmatprep.subr.mxu0 0.0
        %526 = vmatpush2.msra.mxu0 0.0
        %527 = vmatprep.subr.mxu0 0.0
        %528 = vmatpush2.msra.mxu0 0.0
        %529 = vmatprep.subr.mxu0 0.0
        %530 = vmatpush2.msra.mxu0 0.0
        %531 = vmatprep.subr.mxu0 0.0
        %532 = vmatpush2.msra.mxu0 0.0
        %533 = vmatprep.subr.mxu0 0.0
        %534 = vmatpush2.msra.mxu0 0.0
        %535 = vmatprep.subr.mxu0 0.0
        %536 = vmatpush2.msra.mxu0 0.0
        %537 = vmatprep.subr.mxu0 0.0
        %538 = vmatpush2.msra.mxu0 0.0
        %539 = vmatprep.subr.mxu0 0.0
        %540 = vmatpush2.msra.mxu0 0.0
        %541 = vmatprep.subr.mxu0 0.0
        %542 = vmatpush2.msra.mxu0 0.0
        %543 = vmatprep.subr.mxu0 0.0
        %544 = vmatpush2.msra.mxu0 0.0
        %545 = vmatprep.subr.mxu0 0.0
        %546 = vmatpush2.msra.mxu0 0.0
        %547 = vmatprep.subr.mxu0 0.0
        %548 = vmatpush2.msra.mxu0 0.0
        %549 = vmatprep.subr.mxu0 0.0
        %550 = vmatpush2.msra.mxu0 0.0
        %551 = vmatprep.subr.mxu0 0.0
        %552 = vmatpush2.msra.mxu0 0.0
        %553 = vmatprep.subr.mxu0 0.0
        %554 = vmatpush2.msra.mxu0 0.0
        %555 = vmatprep.subr.mxu0 0.0
        %556 = vmatpush2.msra.mxu0 0.0
        %557 = vmatprep.mubr.f32.mxu0 0.0
        %558 = vmatmul.mubr.f32.gmra.mxu0 %v475
        %v559 = vpop.f32.mrf.mxu0
        %v560 = vadd.f32 0.0, %v559
        %v561 = vpop.f32.mrf.mxu0
        %562 = vmatprep.mubr.f32.mxu0 0.0
        %563 = vmatmul.mubr.f32.gmra.mxu0 %v478
        %v564 = vpop.f32.mrf.mxu0
        %v565 = vadd.f32 0.0, %v564
        %v566 = vpop.f32.mrf.mxu0
        %567 = vmatprep.mubr.f32.mxu0 0.0
        %568 = vmatmul.mubr.f32.gmra.mxu0 %v481
        %v569 = vpop.f32.mrf.mxu0
        %v570 = vadd.f32 0.0, %v569
        %v571 = vpop.f32.mrf.mxu0
        %572 = vmatprep.mubr.f32.mxu0 0.0
        %573 = vmatmul.mubr.f32.gmra.mxu0 %v484
        %v574 = vpop.f32.mrf.mxu0
        %v575 = vadd.f32 0.0, %v574
        %v576 = vpop.f32.mrf.mxu0
        %577 = vmatprep.mubr.f32.mxu0 0.0
        %578 = vmatmul.mubr.f32.gmra.mxu0 %v487
        %v579 = vpop.f32.mrf.mxu0
        %v580 = vadd.f32 0.0, %v579
        %v581 = vpop.f32.mrf.mxu0
        %582 = vdwg.mxu0
        %vm583 = vcmask 211968
        %584 = vst.msk [vmem:[#allocation3] sm:$0xff] %vm583, 0.0
        %585 = vst.msk [vmem:[#allocation3 + $0x8] sm:$0xff] %vm583, 0.0
        %586 = vst.msk [vmem:[#allocation3 + $0x10] sm:$0xff] %vm583, 0.0
        %587 = vst.msk [vmem:[#allocation3 + $0x18] sm:$0xff] %vm583, 0.0
        %vm588 = vcmask 207872
        %589 = vst.msk [vmem:[#allocation3 + $0x20] sm:$0xf] %vm588, 0.0
        %595 = vrot.lane.b32.xlu0 %v560, 5
        %v596 = vpop.permute.xlu0 %595
        %597 = vrot.lane.b32.xlu0 %v565, 5
        %v598 = vpop.permute.xlu0 %597
        %599 = vrot.lane.b32.xlu0 %v570, 5
        %v600 = vpop.permute.xlu0 %599
        %601 = vrot.lane.b32.xlu0 %v575, 5
        %v602 = vpop.permute.xlu0 %601
        %603 = vrot.lane.b32.xlu0 %v580, 5
        %v604 = vpop.permute.xlu0 %603
        %vm610 = vcmask 171048
        %611 = vst.msk [vmem:[#allocation3] sm:$0xff] %vm610, %v596
        %612 = vst.msk [vmem:[#allocation3 + $0x8] sm:$0xff] %vm610, %v598
        %613 = vst.msk [vmem:[#allocation3 + $0x10] sm:$0xff] %vm610, %v600
        %614 = vst.msk [vmem:[#allocation3 + $0x18] sm:$0xff] %vm610, %v602
        %vm615 = vcmask 166952
        %616 = vst.msk [vmem:[#allocation3 + $0x20] sm:$0xf] %vm615, %v604
        %v617 = vld [vmem:[#allocation3] sm:$0xf]
        %v618 = vld [vmem:[%s3] sm:$0x1]
        %v620 = vlaneseq
        %v621 = vshrl.u32 %v620, 7
        %v622 = vsub.s32 0, %v621
        %v623 = vrot.slane %v618, %v622
        %v625 = vmul.f32 %v617, %v623
        %v626 = vadd.f32 %v625, 0.0
        %v627 = vld [vmem:[#allocation3 + $0x4] sm:$0xf]
        %s628 = scalar_lea.vmem %s3, 1
        %v629 = vld [vmem:[%s628] sm:$0x1]
        %v631 = vlaneseq
        %v632 = vshrl.u32 %v631, 7
        %v633 = vsub.s32 0, %v632
        %v634 = vrot.slane %v629, %v633
        %635 = vrot.lane.b32.xlu0 %v634, 1
        %v636 = vpop.permute.xlu0 %635
        %v638 = vmul.f32 %v627, %v636
        %640 = vrot.lane.b32.xlu0 %v638, 127
        %v641 = vpop.permute.xlu0 %640
        %v643 = vadd.f32 %v626, %v641
        %v644 = vld [vmem:[#allocation3 + $0x8] sm:$0xf]
        %s645 = scalar_lea.vmem %s3, 2
        %v646 = vld [vmem:[%s645] sm:$0x1]
        %v648 = vlaneseq
        %v649 = vshrl.u32 %v648, 7
        %v650 = vsub.s32 0, %v649
        %v651 = vrot.slane %v646, %v650
        %652 = vrot.lane.b32.xlu0 %v651, 2
        %v653 = vpop.permute.xlu0 %652
        %v655 = vmul.f32 %v644, %v653
        %657 = vrot.lane.b32.xlu0 %v655, 126
        %v658 = vpop.permute.xlu0 %657
        %v660 = vadd.f32 %v643, %v658
        %v661 = vld [vmem:[#allocation3 + $0xc] sm:$0xf]
        %s662 = scalar_lea.vmem %s3, 3
        %v663 = vld [vmem:[%s662] sm:$0x1]
        %v665 = vlaneseq
        %v666 = vshrl.u32 %v665, 7
        %v667 = vsub.s32 0, %v666
        %v668 = vrot.slane %v663, %v667
        %669 = vrot.lane.b32.xlu0 %v668, 4
        %v670 = vpop.permute.xlu0 %669
        %v672 = vmul.f32 %v661, %v670
        %674 = vrot.lane.b32.xlu0 %v672, 124
        %v675 = vpop.permute.xlu0 %674
        %v677 = vadd.f32 %v660, %v675
        %v678 = vld [vmem:[#allocation3 + $0x10] sm:$0xf]
        %s679 = scalar_lea.vmem %s3, 4
        %v680 = vld [vmem:[%s679] sm:$0x1]
        %v682 = vlaneseq
        %v683 = vshrl.u32 %v682, 7
        %v684 = vsub.s32 0, %v683
        %v685 = vrot.slane %v680, %v684
        %686 = vrot.lane.b32.xlu0 %v685, 5
        %v687 = vpop.permute.xlu0 %686
        %v689 = vmul.f32 %v678, %v687
        %691 = vrot.lane.b32.xlu0 %v689, 123
        %v692 = vpop.permute.xlu0 %691
        %v694 = vadd.f32 %v677, %v692
        %v695 = vld [vmem:[#allocation3 + $0x14] sm:$0xf]
        %s696 = scalar_lea.vmem %s3, 5
        %v697 = vld [vmem:[%s696] sm:$0x1]
        %v699 = vlaneseq
        %v700 = vshrl.u32 %v699, 7
        %v701 = vsub.s32 0, %v700
        %v702 = vrot.slane %v697, %v701
        %703 = vrot.lane.b32.xlu0 %v702, 6
        %v704 = vpop.permute.xlu0 %703
        %v706 = vmul.f32 %v695, %v704
        %708 = vrot.lane.b32.xlu0 %v706, 122
        %v709 = vpop.permute.xlu0 %708
        %v711 = vadd.f32 %v694, %v709
        %v712 = vld [vmem:[#allocation3 + $0x18] sm:$0xf]
        %s713 = scalar_lea.vmem %s3, 6
        %v714 = vld [vmem:[%s713] sm:$0x1]
        %v716 = vlaneseq
        %v717 = vshrl.u32 %v716, 7
        %v718 = vsub.s32 0, %v717
        %v719 = vrot.slane %v714, %v718
        %720 = vrot.lane.b32.xlu0 %v719, 8
        %v721 = vpop.permute.xlu0 %720
        %v723 = vmul.f32 %v712, %v721
        %725 = vrot.lane.b32.xlu0 %v723, 120
        %v726 = vpop.permute.xlu0 %725
        %v728 = vadd.f32 %v711, %v726
        %v729 = vld [vmem:[#allocation3 + $0x1c] sm:$0xf]
        %s730 = scalar_lea.vmem %s3, 7
        %v731 = vld [vmem:[%s730] sm:$0x1]
        %v733 = vlaneseq
        %v734 = vshrl.u32 %v733, 7
        %v735 = vsub.s32 0, %v734
        %v736 = vrot.slane %v731, %v735
        %737 = vrot.lane.b32.xlu0 %v736, 9
        %v738 = vpop.permute.xlu0 %737
        %v740 = vmul.f32 %v729, %v738
        %742 = vrot.lane.b32.xlu0 %v740, 119
        %v743 = vpop.permute.xlu0 %742
        %v745 = vadd.f32 %v728, %v743
        %v746 = vld [vmem:[#allocation3 + $0x20] sm:$0xf]
        %s747 = scalar_lea.vmem %s3, 8
        %v748 = vld [vmem:[%s747] sm:$0x1]
        %v750 = vlaneseq
        %v751 = vshrl.u32 %v750, 7
        %v752 = vsub.s32 0, %v751
        %v753 = vrot.slane %v748, %v752
        %754 = vrot.lane.b32.xlu0 %v753, 10
        %v755 = vpop.permute.xlu0 %754
        %v757 = vmul.f32 %v746, %v755
        %759 = vrot.lane.b32.xlu0 %v757, 118
        %v760 = vpop.permute.xlu0 %759
        %v762 = vadd.f32 %v745, %v760
        %v763 = vld [vmem:[%s4] sm:$0xf]
        %765 = vset.pattern.permute.xlu0 0
        %766 = vperm.xlu0 %765, %v763
        %v767 = vpop.permute.xlu0 %766
        %v769 = vadd.f32 %v762, %v767
        %vm770 = vcmp.ge.f32.partialorder %v769, 0.0
        %v771 = vsel %vm770, 1, 0
        %v772 = vcvt.s32.f32 %v771
        %vm773 = vcmask 125952
        %774 = vst.msk [vmem:[%s245] sm:$0xf] %vm773, %v772
        %v775 = vsel %vm773, %v772, 0.0
        %776 = vadd.xlane.f32.xlu0 %v775
        %v777 = vpop.xlane.xlu0 %776
        %v778 = vrot.slane %v777, 4
        %v779 = vadd.f32 %v777, %v778
        %v780 = vrot.slane %v779, 2
        %v781 = vadd.f32 %v779, %v780
        %v782 = vrot.slane %v781, 1
        %v783 = vadd.f32 %v781, %v782
        %s784 = vtos %v783
        %v785 = vstv %s784
        %vm786 = vcmask 0
        %787 = vst.msk [vmem:[%s258] sm:$0x1] %vm786, %v785
        %s788 = sand.u32 %s139, 1
        %s789 = scalar_lea.sflag [#allocation5], %s788
        %s790 = sand.u32 %s139, 1
        %s791 = smul.addr %s790, 4
        %s792 = scalar_lea.vmem [#allocation4], %s791
        %p793 = scmp.lt.s32.totalorder %s21, 1
        %s794 = scalar_select %p793, %s21, 1
        %s795 = scalar_lea.vmem %s6, %s794
        // Predicated region
        $region41: #{tpu_custom_call.1} parent=39 // pred_check
          %p796 = pneg %p149
        $region42: #{tpu_custom_call.1} parent=39 // pred_check_branch
          %798 = sbr.rel (%p796) target = $region44
        $region43: #{tpu_custom_call.1} parent=39 // pred_region
          %s800 = ssub.s32 64, 64
          %801 = vsyncadd %s789, %s800
          %s802 = smul.addr %s21, 64
          %s803 = scalar_lea.hbm %s5, %s802
          %s805 = sshll.u32 %s792, 4
          %s806 = int_to_ptr.vmem [resolvable:$true] %s805
          %808 = dma.vmem_to_hbm [thread:$0]  %s806, 64, %s803, %s789
        $region44: #{tpu_custom_call.1} parent=39 // pred_fallthru
          _
        // Predicated region
        $region45: #{tpu_custom_call.1} parent=39 // pred_check
          %p809 = pneg %p175
        $region46: #{tpu_custom_call.1} parent=39 // pred_check_branch
          %811 = sbr.rel (%p809) target = $region48
        $region47: #{tpu_custom_call.1} parent=39 // pred_region
          _
        $region48: #{tpu_custom_call.1} parent=39 // pred_fallthru
          _
      $region40: #{tpu_custom_call.1} parent=5 // pred_fallthru
        _
      %p812 = scmp.le.s32.totalorder 2, %s16
      // Predicated region
      $region49: #{tpu_custom_call.1} parent=5 // pred_check
        %p813 = pneg %p812
      $region50: #{tpu_custom_call.1} parent=5 // pred_check_branch
        %815 = sbr.rel (%p813) target = $region52
      $region51: #{tpu_custom_call.1} parent=5 // pred_region
        %s816 = ssub.s32 %s16, 2
        // Predicated region
        $region53: #{tpu_custom_call.1} parent=51 // pred_check
          %p817 = pneg %p155
        $region54: #{tpu_custom_call.1} parent=51 // pred_check_branch
          %819 = sbr.rel (%p817) target = $region56
        $region55: #{tpu_custom_call.1} parent=51 // pred_region
          %s820 = sand.u32 %s140, 1
          %s821 = scalar_lea.sflag [#allocation5], %s820
          %s822 = sand.u32 %s140, 1
          %s823 = smul.addr %s822, 4
          %s824 = scalar_lea.vmem [#allocation4], %s823
          %825 = dma.done %s821, 64
        $region56: #{tpu_custom_call.1} parent=51 // pred_fallthru
          _
        // Predicated region
        $region57: #{tpu_custom_call.1} parent=51 // pred_check
          %p826 = pneg %p181
        $region58: #{tpu_custom_call.1} parent=51 // pred_check_branch
          %828 = sbr.rel (%p826) target = $region60
        $region59: #{tpu_custom_call.1} parent=51 // pred_region
          %p829 = scmp.lt.s32.totalorder %s22, 1
          %s830 = scalar_select %p829, %s22, 1
          %s831 = scalar_lea.vmem %s6, %s830
        $region60: #{tpu_custom_call.1} parent=51 // pred_fallthru
          _
      $region52: #{tpu_custom_call.1} parent=5 // pred_fallthru
        _
    $region6: #{tpu_custom_call.1} parent=1 // loop_footer
      %s20 = sadd.s32 1, %s16
    $region7: #{tpu_custom_call.1} parent=1 // loop_footer_branch
      %15 = sbr.rel target = $region3
    $region8: #{tpu_custom_call.1} parent=1 // loop_exit
      _
    %832 = vsyncpa [#allocation5], 1
    %s833 = scalar_lea.sflag [#allocation5], 1
    %834 = vsyncpa %s833, 1

</llo_original>
